<compile_context>
chip_gen: v7x
topology: tpu7x:2x2x1
jax: 0.10.0
libtpu: 0.0.40
codegen_flags: <defaults>
</compile_context>

<pallas_src>
import jax
import jax.numpy as jnp
from jax.experimental import pallas as pl
from jax.experimental.pallas import tpu as pltpu


# ----------------------------- Pallas kernel --------------------------------

def actor_beta_kernel(obs_ref, w1_ref, b1_ref, w2_ref, b2_ref,
                      wab_ref, bab_ref, out_ref):
    # bf16 operands on the MXU, f32 accumulation; activations in f32.
    x = obs_ref[...].astype(w1_ref.dtype)
    h = jnp.tanh(
        jnp.dot(x, w1_ref[...], preferred_element_type=jnp.float32)
        + b1_ref[...]
    )
    h = jnp.tanh(
        jnp.dot(h.astype(w2_ref.dtype), w2_ref[...],
                preferred_element_type=jnp.float32)
        + b2_ref[...]
    )
    # Fused, lane-dense (TM, 128) alpha|beta head (padded columns are zero
    # weight -> softplus(0)+1, sliced off in the wrapper).
    z = (jnp.dot(h.astype(wab_ref.dtype), wab_ref[...],
                 preferred_element_type=jnp.float32)
         + bab_ref[...])
    # Numerically stable softplus(z) = max(z, 0) + log1p(exp(-|z|)), then +1.
    sp = jnp.maximum(z, 0.0) + jnp.log1p(jnp.exp(-jnp.abs(z)))
    out_ref[...] = sp + 1.0


# ------------------------------ host wrapper ---------------------------------

def _round_up(n, m):
    return ((n + m - 1) // m) * m


def _dimension_semantics(grid_len):
    """CORE_PARALLEL only on v7x-class parts (2 TCs) with >=2 grid steps."""
    if grid_len >= 2:
        try:
            kind = jax.devices()[0].device_kind.lower().replace(" ", "")
        except Exception:
            kind = ""
        if "v7" in kind or "tpu7" in kind:
            return (pltpu.CORE_PARALLEL,)
    return ("parallel",)


def preprocess_params(params, compute_dtype=jnp.bfloat16, lane=128):
    """One-time: fuse alpha|beta head, zero-pad it to a lane-dense width,
    cast weights to the matmul compute dtype."""
    action_dim = params["wa"].shape[1]
    n = 2 * action_dim
    n_pad = max(lane, _round_up(n, lane))
    wab = jnp.concatenate([params["wa"], params["wb"]], axis=1)   # (h2, 2A)
    bab = jnp.concatenate([params["ba"], params["bb"]], axis=1)   # (1, 2A)
    wab = jnp.pad(wab, ((0, 0), (0, n_pad - n)))
    bab = jnp.pad(bab, ((0, 0), (0, n_pad - n)))
    return {
        "w1": params["w1"].astype(compute_dtype),
        "b1": params["b1"].astype(jnp.float32),
        "w2": params["w2"].astype(compute_dtype),
        "b2": params["b2"].astype(jnp.float32),
        "wab": wab.astype(compute_dtype),
        "bab": bab.astype(jnp.float32),
        "action_dim": action_dim,
        "head_width": n_pad,
    }


def actor_beta_forward(obs, prep, *, tm=1024):
    """obs: (B, obs_dim) float32.  prep: preprocess_params(...) output.
    Returns (alpha, beta), each (B, action_dim) float32."""
    B, obs_dim = obs.shape
    hidden_1 = prep["w1"].shape[1]
    hidden_2 = prep["w2"].shape[1]
    action_dim = prep["action_dim"]
    n_pad = prep["head_width"]

    # Large batch tile (multiple of 8 sublanes), clamped only for tiny batches.
    tm = int(min(tm, _round_up(B, 8)))
    grid_len = pl.cdiv(B, tm)          # ragged last tile handled by Pallas

    # Advisory cost hint for the XLA scheduler.
    flops = 2 * B * (obs_dim * hidden_1 + hidden_1 * hidden_2
                     + hidden_2 * n_pad)
    transcendentals = B * (hidden_1 + hidden_2 + n_pad)
    bytes_accessed = int(
        B * obs_dim * 4 + B * n_pad * 4
        + (obs_dim * hidden_1 + hidden_1 * hidden_2 + hidden_2 * n_pad) * 2
        + (hidden_1 + hidden_2 + n_pad) * 4
    )

    const = lambda i: (0, 0)   # weights/biases resident across grid steps

    def _call(dim_sem):
        return pl.pallas_call(
            actor_beta_kernel,
            out_shape=jax.ShapeDtypeStruct((B, n_pad), jnp.float32),
            grid=(grid_len,),
            in_specs=[
                pl.BlockSpec((tm, obs_dim), lambda i: (i, 0)),      # obs tile
                pl.BlockSpec((obs_dim, hidden_1), const),           # w1
                pl.BlockSpec((1, hidden_1), const),                 # b1
                pl.BlockSpec((hidden_1, hidden_2), const),          # w2
                pl.BlockSpec((1, hidden_2), const),                 # b2
                pl.BlockSpec((hidden_2, n_pad), const),             # w_alpha|beta
                pl.BlockSpec((1, n_pad), const),                    # b_alpha|beta
            ],
            out_specs=pl.BlockSpec((tm, n_pad), lambda i: (i, 0)),
            compiler_params=pltpu.CompilerParams(
                dimension_semantics=dim_sem),
            cost_estimate=pl.CostEstimate(
                flops=flops, transcendentals=transcendentals,
                bytes_accessed=bytes_accessed),
        )(obs, prep["w1"], prep["b1"], prep["w2"], prep["b2"],
          prep["wab"], prep["bab"])

    dim_sem = _dimension_semantics(grid_len)
    try:
        out = _call(dim_sem)
    except Exception:
        if dim_sem == (pltpu.CORE_PARALLEL,):
            out = _call(("parallel",))   # safe fallback if core-parallel rejected
        else:
            raise

    alpha = out[:, :action_dim]
    beta = out[:, action_dim:2 * action_dim]
    return alpha, beta


# ----------------------- deterministic parameter init -----------------------

def orthogonal_(key, shape, gain=1.0):
    """Mimics torch.nn.init.orthogonal_ for a 2-D weight of `shape` (out, in)."""
    rows, cols = shape
    flat = jax.random.normal(key, (rows, cols), dtype=jnp.float32)
    if rows < cols:
        flat = flat.T
    q, r = jnp.linalg.qr(flat)
    d = jnp.diag(r)
    sign = jnp.where(d == 0, 1.0, jnp.sign(d))   # robust against zero diagonal
    q = q * sign[None, :]
    if rows < cols:
        q = q.T
    return gain * q


def init_actor_beta_params(key, obs_dim, action_dim, hidden_1=128, hidden_2=128):
    k1, k2, k3, k4 = jax.random.split(key, 4)
    # PyTorch weights are (out, in); kernel wants (in, out) -> transpose.
    w1 = orthogonal_(k1, (hidden_1, obs_dim), gain=1.0).T
    w2 = orthogonal_(k2, (hidden_2, hidden_1), gain=1.0).T
    wa = orthogonal_(k3, (action_dim, hidden_2), gain=0.01).T
    wb = orthogonal_(k4, (action_dim, hidden_2), gain=0.01).T
    return {
        "w1": w1, "b1": jnp.zeros((1, hidden_1), jnp.float32),
        "w2": w2, "b2": jnp.zeros((1, hidden_2), jnp.float32),
        "wa": wa, "ba": jnp.zeros((1, action_dim), jnp.float32),
        "wb": wb, "bb": jnp.zeros((1, action_dim), jnp.float32),
    }


# ------------------------------ pure-JAX ref ---------------------------------

def reference_forward(obs, p):
    x = jnp.tanh(obs @ p["w1"] + p["b1"])
    x = jnp.tanh(x @ p["w2"] + p["b2"])
    alpha = jax.nn.softplus(x @ p["wa"] + p["ba"]) + 1.0
    beta = jax.nn.softplus(x @ p["wb"] + p["bb"]) + 1.0
    return alpha, beta


# ----------------------------------- main ------------------------------------

if __name__ == "__main__":
    key = jax.random.PRNGKey(0)
    k_param, k_obs1, k_obs2 = jax.random.split(key, 3)

    obs_dim, action_dim = 32, 4
    hidden_1 = hidden_2 = 128
    params = init_actor_beta_params(k_param, obs_dim, action_dim,
                                    hidden_1, hidden_2)
    prep = preprocess_params(params)   # one-time fuse + pad + bf16 cast

    # bf16 matmuls drift from the f32 reference -> use a looser tolerance.
    ATOL = RTOL = 2e-2

    # Small single-tile case (B=8 -> one grid step, tm clamped to 8).
    obs_small = jax.random.normal(k_obs1, (8, obs_dim), dtype=jnp.float32)
    a_small, b_small = actor_beta_forward(obs_small, prep)
    jax.block_until_ready((a_small, b_small))

    a_ref, b_ref = reference_forward(obs_small, params)
    assert a_small.shape == (8, action_dim) and b_small.shape == (8, action_dim)
    assert jnp.allclose(a_small, a_ref, atol=ATOL, rtol=RTOL)
    assert jnp.allclose(b_small, b_ref, atol=ATOL, rtol=RTOL)

    # Multi-step + ragged last tile: B=1500, tm=1024 -> grid=2, last tile has
    # 476 valid rows (no host-side padding, masked writeback for the rest).
    obs_big = jax.random.normal(k_obs2, (1500, obs_dim), dtype=jnp.float32)
    a_big, b_big = actor_beta_forward(obs_big, prep, tm=1024)
    jax.block_until_ready((a_big, b_big))

    a_ref2, b_ref2 = reference_forward(obs_big, params)
    assert a_big.shape == (1500, action_dim) and b_big.shape == (1500, action_dim)
    assert jnp.allclose(a_big, a_ref2, atol=ATOL, rtol=RTOL)
    assert jnp.allclose(b_big, b_ref2, atol=ATOL, rtol=RTOL)

    print("KERNEL_OK")
</pallas_src>

<mosaic_0001>
module attributes {stable_mosaic.version = 11 : i64} {
  func.func @actor_beta_kernel(%arg0: i32, %arg1: memref<8x32xf32, #tpu.memory_space<vmem>>, %arg2: memref<32x128xbf16, #tpu.memory_space<vmem>>, %arg3: memref<1x128xf32, #tpu.memory_space<vmem>>, %arg4: memref<128x128xbf16, #tpu.memory_space<vmem>>, %arg5: memref<1x128xf32, #tpu.memory_space<vmem>>, %arg6: memref<128x128xbf16, #tpu.memory_space<vmem>>, %arg7: memref<1x128xf32, #tpu.memory_space<vmem>>, %arg8: memref<8x128xf32, #tpu.memory_space<vmem>>) attributes {dimension_semantics = [#tpu.dimension_semantics<parallel>], iteration_bounds = array<i64: 1>, scalar_prefetch = 0 : i64, scratch_operands = 0 : i64, tpu.core_type = #tpu.core_type<tc>, window_params = [{transform_indices = @transform_0, window_bounds = array<i64: 8, 32>}, {pipeline_mode = #tpu.pipeline_mode<synchronous>, transform_indices = @transform_1, window_bounds = array<i64: 32, 128>}, {pipeline_mode = #tpu.pipeline_mode<synchronous>, transform_indices = @transform_2, window_bounds = array<i64: 1, 128>}, {pipeline_mode = #tpu.pipeline_mode<synchronous>, transform_indices = @transform_3, window_bounds = array<i64: 128, 128>}, {pipeline_mode = #tpu.pipeline_mode<synchronous>, transform_indices = @transform_4, window_bounds = array<i64: 1, 128>}, {pipeline_mode = #tpu.pipeline_mode<synchronous>, transform_indices = @transform_5, window_bounds = array<i64: 128, 128>}, {pipeline_mode = #tpu.pipeline_mode<synchronous>, transform_indices = @transform_6, window_bounds = array<i64: 1, 128>}, {transform_indices = @transform_7, window_bounds = array<i64: 8, 128>}]} {
    %c0 = arith.constant 0 : index
    %c0_0 = arith.constant 0 : index
    %0 = vector.load %arg1[%c0, %c0_0] : memref<8x32xf32, #tpu.memory_space<vmem>>, vector<8x32xf32>
    %1 = arith.truncf %0 : vector<8x32xf32> to vector<8x32xbf16>
    %c0_1 = arith.constant 0 : index
    %c0_2 = arith.constant 0 : index
    %2 = vector.load %arg2[%c0_1, %c0_2] : memref<32x128xbf16, #tpu.memory_space<vmem>>, vector<32x128xbf16>
    %cst = arith.constant dense<0.000000e+00> : vector<8x128xf32>
    %3 = tpu.matmul %1, %2, %cst {dimension_numbers = #tpu.dot_dimension_numbers<[1], [0], [0], [1], [0, 0, 1, 1], [], []>} : vector<8x32xbf16>, vector<32x128xbf16>, vector<8x128xf32> -> vector<8x128xf32>
    %c0_3 = arith.constant 0 : index
    %c0_4 = arith.constant 0 : index
    %4 = vector.load %arg3[%c0_3, %c0_4] : memref<1x128xf32, #tpu.memory_space<vmem>>, vector<1x128xf32>
    %5 = vector.broadcast %4 : vector<1x128xf32> to vector<8x128xf32>
    %6 = arith.addf %3, %5 : vector<8x128xf32>
    %7 = math.tanh %6 : vector<8x128xf32>
    %8 = arith.truncf %7 : vector<8x128xf32> to vector<8x128xbf16>
    %c0_5 = arith.constant 0 : index
    %c0_6 = arith.constant 0 : index
    %9 = vector.load %arg4[%c0_5, %c0_6] : memref<128x128xbf16, #tpu.memory_space<vmem>>, vector<128x128xbf16>
    %cst_7 = arith.constant dense<0.000000e+00> : vector<8x128xf32>
    %10 = tpu.matmul %8, %9, %cst_7 {dimension_numbers = #tpu.dot_dimension_numbers<[1], [0], [0], [1], [0, 0, 1, 1], [], []>} : vector<8x128xbf16>, vector<128x128xbf16>, vector<8x128xf32> -> vector<8x128xf32>
    %c0_8 = arith.constant 0 : index
    %c0_9 = arith.constant 0 : index
    %11 = vector.load %arg5[%c0_8, %c0_9] : memref<1x128xf32, #tpu.memory_space<vmem>>, vector<1x128xf32>
    %12 = vector.broadcast %11 : vector<1x128xf32> to vector<8x128xf32>
    %13 = arith.addf %10, %12 : vector<8x128xf32>
    %14 = math.tanh %13 : vector<8x128xf32>
    %15 = arith.truncf %14 : vector<8x128xf32> to vector<8x128xbf16>
    %c0_10 = arith.constant 0 : index
    %c0_11 = arith.constant 0 : index
    %16 = vector.load %arg6[%c0_10, %c0_11] : memref<128x128xbf16, #tpu.memory_space<vmem>>, vector<128x128xbf16>
    %cst_12 = arith.constant dense<0.000000e+00> : vector<8x128xf32>
    %17 = tpu.matmul %15, %16, %cst_12 {dimension_numbers = #tpu.dot_dimension_numbers<[1], [0], [0], [1], [0, 0, 1, 1], [], []>} : vector<8x128xbf16>, vector<128x128xbf16>, vector<8x128xf32> -> vector<8x128xf32>
    %c0_13 = arith.constant 0 : index
    %c0_14 = arith.constant 0 : index
    %18 = vector.load %arg7[%c0_13, %c0_14] : memref<1x128xf32, #tpu.memory_space<vmem>>, vector<1x128xf32>
    %19 = vector.broadcast %18 : vector<1x128xf32> to vector<8x128xf32>
    %20 = arith.addf %17, %19 : vector<8x128xf32>
    %cst_15 = arith.constant 0.000000e+00 : f32
    %21 = vector.broadcast %cst_15 : f32 to vector<8x128xf32>
    %22 = arith.maximumf %20, %21 : vector<8x128xf32>
    %23 = math.absf %20 : vector<8x128xf32>
    %cst_16 = arith.constant 0.000000e+00 : f32
    %24 = vector.broadcast %cst_16 : f32 to vector<8x128xf32>
    %25 = arith.subf %24, %23 : vector<8x128xf32>
    %26 = math.exp %25 : vector<8x128xf32>
    %27 = math.log1p %26 : vector<8x128xf32>
    %28 = arith.addf %22, %27 : vector<8x128xf32>
    %cst_17 = arith.constant 1.000000e+00 : f32
    %29 = vector.broadcast %cst_17 : f32 to vector<8x128xf32>
    %30 = arith.addf %28, %29 : vector<8x128xf32>
    %c0_18 = arith.constant 0 : index
    %c0_19 = arith.constant 0 : index
    %31 = vector.load %arg8[%c0_18, %c0_19] : memref<8x128xf32, #tpu.memory_space<vmem>>, vector<8x128xf32>
    tpu.vector_store %arg8[%c0_18, %c0_19], %30 {strides = array<i32>} : memref<8x128xf32, #tpu.memory_space<vmem>>, vector<8x128xf32>,
    return
  }
  func.func @transform_0(%arg0: i32) -> (i32, i32) {
    %c0_i32 = arith.constant 0 : i32
    %c0_i32_0 = arith.constant 0 : i32
    return %arg0, %c0_i32 : i32, i32
  }
  func.func @transform_1(%arg0: i32) -> (i32, i32) {
    %c0_i32 = arith.constant 0 : i32
    %c0_i32_0 = arith.constant 0 : i32
    %c0_i32_1 = arith.constant 0 : i32
    return %c0_i32, %c0_i32_0 : i32, i32
  }
  func.func @transform_2(%arg0: i32) -> (i32, i32) {
    %c0_i32 = arith.constant 0 : i32
    %c0_i32_0 = arith.constant 0 : i32
    %c0_i32_1 = arith.constant 0 : i32
    return %c0_i32, %c0_i32_0 : i32, i32
  }
  func.func @transform_3(%arg0: i32) -> (i32, i32) {
    %c0_i32 = arith.constant 0 : i32
    %c0_i32_0 = arith.constant 0 : i32
    %c0_i32_1 = arith.constant 0 : i32
    return %c0_i32, %c0_i32_0 : i32, i32
  }
  func.func @transform_4(%arg0: i32) -> (i32, i32) {
    %c0_i32 = arith.constant 0 : i32
    %c0_i32_0 = arith.constant 0 : i32
    %c0_i32_1 = arith.constant 0 : i32
    return %c0_i32, %c0_i32_0 : i32, i32
  }
  func.func @transform_5(%arg0: i32) -> (i32, i32) {
    %c0_i32 = arith.constant 0 : i32
    %c0_i32_0 = arith.constant 0 : i32
    %c0_i32_1 = arith.constant 0 : i32
    return %c0_i32, %c0_i32_0 : i32, i32
  }
  func.func @transform_6(%arg0: i32) -> (i32, i32) {
    %c0_i32 = arith.constant 0 : i32
    %c0_i32_0 = arith.constant 0 : i32
    %c0_i32_1 = arith.constant 0 : i32
    return %c0_i32, %c0_i32_0 : i32, i32
  }
  func.func @transform_7(%arg0: i32) -> (i32, i32) {
    %c0_i32 = arith.constant 0 : i32
    %c0_i32_0 = arith.constant 0 : i32
    return %arg0, %c0_i32 : i32, i32
  }
}

</mosaic_0001>

<llo_original>
// kernel: tpu_custom_call.1
$region0: #{tpu_custom_call.1}
  #allocation0 [shape = 'u32[]', space=smem, size = 0x4, offset = 0x4, fixed_abs, tag = 'smem constant byte address 0x4 - core index']
  #allocation1 [shape = 'u32[144,128]{1,0:T(1,128)}', space=vmem, size = 0x12000, scoped, tag = 'internal scratch']
  %s0 = inlined_call_operand.hbm [shape: f32[8,32], index: 0, kind: input, shape index: {}]
  %s1 = inlined_call_operand.hbm [shape: bf16[32,128], index: 1, kind: input, shape index: {}]
  %s2 = inlined_call_operand.vmem [shape: f32[1,128], index: 2, kind: input, shape index: {}]
  %s3 = inlined_call_operand.hbm [shape: bf16[128,128], index: 3, kind: input, shape index: {}]
  %s4 = inlined_call_operand.vmem [shape: f32[1,128], index: 4, kind: input, shape index: {}]
  %s5 = inlined_call_operand.hbm [shape: bf16[128,128], index: 5, kind: input, shape index: {}]
  %s6 = inlined_call_operand.vmem [shape: f32[1,128], index: 6, kind: input, shape index: {}]
  %s7 = inlined_call_operand.hbm [shape: f32[8,128], index: 7, kind: output, shape index: {}]
  %s8 = sld [smem:[#allocation0]]
  $region54: #{tpu_custom_call.1} parent=0
    _
  %s10 = ssub.s32 1, %s8
  %s11 = scalar_select 0, %s10, %s8
  $region1: #{tpu_custom_call.1} parent=0
    #allocation2 [shape = 'u8[4096]{0}', space=vmem, size = 0x1000, scoped, tag = 'input window, operand 0, single buffered']
    #allocation3 [shape = 's32[1]{0}', space=sflag, size = 0x4, scoped, tag = 'scoped memory for tpu_custom_call.1']
    #allocation4 [shape = 's32[1]{0}', space=sflag, size = 0x4, scoped, tag = 'scoped memory for tpu_custom_call.1']
    #allocation5 [shape = 'u8[8192]{0}', space=vmem, size = 0x2000, scoped, tag = 'input window, operand 1, single buffered']
    #allocation6 [shape = 's32[1]{0}', space=sflag, size = 0x4, scoped, tag = 'scoped memory for tpu_custom_call.1']
    #allocation7 [shape = 'u8[32768]{0}', space=vmem, size = 0x8000, scoped, tag = 'input window, operand 3, single buffered']
    #allocation8 [shape = 'u8[32768]{0}', space=vmem, size = 0x8000, scoped, tag = 'input window, operand 5, single buffered']
    #allocation9 [shape = 's32[1]{0}', space=sflag, size = 0x4, scoped, tag = 'scoped memory for tpu_custom_call.1']
    #allocation10 [shape = 'u8[4096]{0}', space=vmem, size = 0x1000, scoped, tag = 'output window, operand 0, single buffered']
    %12 = vsyncpa [#allocation3], 0
    %13 = vsyncpa [#allocation6], 0
    %14 = vsyncpa [#allocation9], 0
    %15 = vsyncpa [#allocation4], 0
    // Predicated region
    $region2: #{tpu_custom_call.1} parent=1 // pred_check
      _
    $region3: #{tpu_custom_call.1} parent=1 // pred_check_branch
      %17 = sbr.rel (0) target = $region5
    $region4: #{tpu_custom_call.1} parent=1 // pred_region
      %s19 = ssub.s32 128, 128
      %20 = vsyncadd [#allocation3], %s19
      %s22 = sshll.u32 [#allocation2], 4
      %s23 = int_to_ptr.vmem [resolvable:$true] %s22
      %25 = dma.hbm_to_vmem [thread:$0]  %s0, 128, %s23, [#allocation3]
    $region5: #{tpu_custom_call.1} parent=1 // pred_fallthru
      _
    // Predicated region
    $region6: #{tpu_custom_call.1} parent=1 // pred_check
      _
    $region7: #{tpu_custom_call.1} parent=1 // pred_check_branch
      %27 = sbr.rel (0) target = $region9
    $region8: #{tpu_custom_call.1} parent=1 // pred_region
      %s29 = ssub.s32 256, 256
      %30 = vsyncadd [#allocation6], %s29
      %s31 = sshll.u32 [#allocation5], 4
      %s32 = int_to_ptr.vmem [resolvable:$true] %s31
      %37 = dma.hbm_to_vmem [thread:$0]  %s1, 256, %s32, [#allocation6], 64, 64, 4
    $region9: #{tpu_custom_call.1} parent=1 // pred_fallthru
      _
    // Predicated region
    $region10: #{tpu_custom_call.1} parent=1 // pred_check
      _
    $region11: #{tpu_custom_call.1} parent=1 // pred_check_branch
      %39 = sbr.rel (0) target = $region13
    $region12: #{tpu_custom_call.1} parent=1 // pred_region
      _
    $region13: #{tpu_custom_call.1} parent=1 // pred_fallthru
      _
    // Predicated region
    $region14: #{tpu_custom_call.1} parent=1 // pred_check
      _
    $region15: #{tpu_custom_call.1} parent=1 // pred_check_branch
      %41 = sbr.rel (0) target = $region17
    $region16: #{tpu_custom_call.1} parent=1 // pred_region
      %s43 = ssub.s32 1024, 1024
      %44 = vsyncadd [#allocation6], %s43
      %s45 = sshll.u32 [#allocation7], 4
      %s46 = int_to_ptr.vmem [resolvable:$true] %s45
      %51 = dma.hbm_to_vmem [thread:$0]  %s3, 1024, %s46, [#allocation6], 64, 64, 4
    $region17: #{tpu_custom_call.1} parent=1 // pred_fallthru
      _
    // Predicated region
    $region18: #{tpu_custom_call.1} parent=1 // pred_check
      _
    $region19: #{tpu_custom_call.1} parent=1 // pred_check_branch
      %53 = sbr.rel (0) target = $region21
    $region20: #{tpu_custom_call.1} parent=1 // pred_region
      _
    $region21: #{tpu_custom_call.1} parent=1 // pred_fallthru
      _
    // Predicated region
    $region22: #{tpu_custom_call.1} parent=1 // pred_check
      _
    $region23: #{tpu_custom_call.1} parent=1 // pred_check_branch
      %55 = sbr.rel (0) target = $region25
    $region24: #{tpu_custom_call.1} parent=1 // pred_region
      %s57 = ssub.s32 1024, 1024
      %58 = vsyncadd [#allocation9], %s57
      %s59 = sshll.u32 [#allocation8], 4
      %s60 = int_to_ptr.vmem [resolvable:$true] %s59
      %65 = dma.hbm_to_vmem [thread:$0]  %s5, 1024, %s60, [#allocation9], 64, 64, 4
    $region25: #{tpu_custom_call.1} parent=1 // pred_fallthru
      _
    // Predicated region
    $region26: #{tpu_custom_call.1} parent=1 // pred_check
      _
    $region27: #{tpu_custom_call.1} parent=1 // pred_check_branch
      %67 = sbr.rel (0) target = $region29
    $region28: #{tpu_custom_call.1} parent=1 // pred_region
      _
    $region29: #{tpu_custom_call.1} parent=1 // pred_fallthru
      _
    // Predicated region
    $region30: #{tpu_custom_call.1} parent=1 // pred_check
      _
    $region31: #{tpu_custom_call.1} parent=1 // pred_check_branch
      %69 = sbr.rel (0) target = $region33
    $region32: #{tpu_custom_call.1} parent=1 // pred_region
      %70 = dma.done [#allocation3], 128
    $region33: #{tpu_custom_call.1} parent=1 // pred_fallthru
      _
    // Predicated region
    $region34: #{tpu_custom_call.1} parent=1 // pred_check
      _
    $region35: #{tpu_custom_call.1} parent=1 // pred_check_branch
      %72 = sbr.rel (0) target = $region37
    $region36: #{tpu_custom_call.1} parent=1 // pred_region
      %73 = dma.done [#allocation6], 256
    $region37: #{tpu_custom_call.1} parent=1 // pred_fallthru
      _
    // Predicated region
    $region38: #{tpu_custom_call.1} parent=1 // pred_check
      _
    $region39: #{tpu_custom_call.1} parent=1 // pred_check_branch
      %75 = sbr.rel (0) target = $region41
    $region40: #{tpu_custom_call.1} parent=1 // pred_region
      %76 = dma.done [#allocation6], 1024
    $region41: #{tpu_custom_call.1} parent=1 // pred_fallthru
      _
    // Predicated region
    $region42: #{tpu_custom_call.1} parent=1 // pred_check
      _
    $region43: #{tpu_custom_call.1} parent=1 // pred_check_branch
      %78 = sbr.rel (0) target = $region45
    $region44: #{tpu_custom_call.1} parent=1 // pred_region
      %79 = dma.done [#allocation9], 1024
    $region45: #{tpu_custom_call.1} parent=1 // pred_fallthru
      _
    %v81 = vld [vmem:[#allocation2] sm:$0xff]
    %v82 = vpack.c.bf16 %v81, %v81
    %v83 = vld [vmem:[#allocation5] sm:$0xf]
    %v84 = vld [vmem:[#allocation5 + $0x4] sm:$0xf]
    %v85 = vld [vmem:[#allocation5 + $0x8] sm:$0xf]
    %v86 = vld [vmem:[#allocation5 + $0xc] sm:$0xf]
    %v87 = vld [vmem:[%s2] sm:$0x1]
    %v89 = vlaneseq
    %v90 = vshrl.u32 %v89, 7
    %v91 = vsub.s32 0, %v90
    %v92 = vrot.slane %v87, %v91
    %v98 = vunpack.c.l.b16 %v83
    %v99 = vunpack.c.l.b16 %v84
    %v100 = vunpack.c.l.b16 %v85
    %v101 = vunpack.c.l.b16 %v86
    %v102 = vpack.c.b16 %v99, %v98
    %v103 = vpack.c.b16 %v101, %v100
    %vm106 = vcmask 261120
    %v108 = vsel %vm106, %v82, 0
    %110 = vmatprep.subr.bf16.mxu0 0
    %111 = vmatpush1.bf16.msra.mxu0 %v102
    %112 = vmatprep.subr.bf16.mxu0 0
    %113 = vmatpush1.bf16.msra.mxu0 %v103
    %114 = vmatprep.subr.bf16.mxu0 0
    %115 = vmatpush1.bf16.msra.mxu0 0
    %116 = vmatprep.subr.bf16.mxu0 0
    %117 = vmatpush1.bf16.msra.mxu0 0
    %118 = vmatprep.subr.bf16.mxu0 0
    %119 = vmatpush1.bf16.msra.mxu0 0
    %120 = vmatprep.subr.bf16.mxu0 0
    %121 = vmatpush1.bf16.msra.mxu0 0
    %122 = vmatprep.subr.bf16.mxu0 0
    %123 = vmatpush1.bf16.msra.mxu0 0
    %124 = vmatprep.subr.bf16.mxu0 0
    %125 = vmatpush1.bf16.msra.mxu0 0
    %126 = vmatprep.subr.bf16.mxu0 0
    %127 = vmatpush1.bf16.msra.mxu0 0
    %128 = vmatprep.subr.bf16.mxu0 0
    %129 = vmatpush1.bf16.msra.mxu0 0
    %130 = vmatprep.subr.bf16.mxu0 0
    %131 = vmatpush1.bf16.msra.mxu0 0
    %132 = vmatprep.subr.bf16.mxu0 0
    %133 = vmatpush1.bf16.msra.mxu0 0
    %134 = vmatprep.subr.bf16.mxu0 0
    %135 = vmatpush1.bf16.msra.mxu0 0
    %136 = vmatprep.subr.bf16.mxu0 0
    %137 = vmatpush1.bf16.msra.mxu0 0
    %138 = vmatprep.subr.bf16.mxu0 0
    %139 = vmatpush1.bf16.msra.mxu0 0
    %140 = vmatprep.subr.bf16.mxu0 0
    %141 = vmatpush1.bf16.msra.mxu0 0
    %142 = vmatprep.mubr.bf16.mxu0 0
    %143 = vmatmul.mubr.bf16.gmra.mrb[0].mxu0 %v108
    %v144 = vpop.f32.mrb[0].mxu0
    %v145 = vadd.f32 %v92, %v144
    %v146 = vpop.f32.mrb[0].mxu0
    %v147 = vpop.f32.mrb[0].mxu0
    %v148 = vpop.f32.mrb[0].mxu0
    %149 = vdwg.mxu0
    %v150 = vtanh.pop %v145
    %v151 = vpack.c.bf16 %v150, %v150
    %v152 = vld [vmem:[#allocation7] sm:$0xf]
    %v153 = vld [vmem:[#allocation7 + $0x4] sm:$0xf]
    %v154 = vld [vmem:[#allocation7 + $0x8] sm:$0xf]
    %v155 = vld [vmem:[#allocation7 + $0xc] sm:$0xf]
    %v156 = vld [vmem:[#allocation7 + $0x10] sm:$0xf]
    %v157 = vld [vmem:[#allocation7 + $0x14] sm:$0xf]
    %v158 = vld [vmem:[#allocation7 + $0x18] sm:$0xf]
    %v159 = vld [vmem:[#allocation7 + $0x1c] sm:$0xf]
    %v160 = vld [vmem:[#allocation7 + $0x20] sm:$0xf]
    %v161 = vld [vmem:[#allocation7 + $0x24] sm:$0xf]
    %v162 = vld [vmem:[#allocation7 + $0x28] sm:$0xf]
    %v163 = vld [vmem:[#allocation7 + $0x2c] sm:$0xf]
    %v164 = vld [vmem:[#allocation7 + $0x30] sm:$0xf]
    %v165 = vld [vmem:[#allocation7 + $0x34] sm:$0xf]
    %v166 = vld [vmem:[#allocation7 + $0x38] sm:$0xf]
    %v167 = vld [vmem:[#allocation7 + $0x3c] sm:$0xf]
    %v168 = vld [vmem:[%s4] sm:$0x1]
    %v170 = vlaneseq
    %v171 = vshrl.u32 %v170, 7
    %v172 = vsub.s32 0, %v171
    %v173 = vrot.slane %v168, %v172
    %v191 = vunpack.c.l.b16 %v152
    %v192 = vunpack.c.l.b16 %v153
    %v193 = vunpack.c.l.b16 %v154
    %v194 = vunpack.c.l.b16 %v155
    %v195 = vunpack.c.l.b16 %v156
    %v196 = vunpack.c.l.b16 %v157
    %v197 = vunpack.c.l.b16 %v158
    %v198 = vunpack.c.l.b16 %v159
    %v199 = vunpack.c.l.b16 %v160
    %v200 = vunpack.c.l.b16 %v161
    %v201 = vunpack.c.l.b16 %v162
    %v202 = vunpack.c.l.b16 %v163
    %v203 = vunpack.c.l.b16 %v164
    %v204 = vunpack.c.l.b16 %v165
    %v205 = vunpack.c.l.b16 %v166
    %v206 = vunpack.c.l.b16 %v167
    %v207 = vpack.c.b16 %v192, %v191
    %v208 = vpack.c.b16 %v194, %v193
    %v209 = vpack.c.b16 %v196, %v195
    %v210 = vpack.c.b16 %v198, %v197
    %v211 = vpack.c.b16 %v200, %v199
    %v212 = vpack.c.b16 %v202, %v201
    %v213 = vpack.c.b16 %v204, %v203
    %v214 = vpack.c.b16 %v206, %v205
    %223 = vmatprep.subr.bf16.mxu0 0
    %224 = vmatpush1.bf16.msra.mxu0 %v207
    %225 = vmatprep.subr.bf16.mxu0 0
    %226 = vmatpush1.bf16.msra.mxu0 %v208
    %227 = vmatprep.subr.bf16.mxu0 0
    %228 = vmatpush1.bf16.msra.mxu0 %v209
    %229 = vmatprep.subr.bf16.mxu0 0
    %230 = vmatpush1.bf16.msra.mxu0 %v210
    %231 = vmatprep.subr.bf16.mxu0 0
    %232 = vmatpush1.bf16.msra.mxu0 %v211
    %233 = vmatprep.subr.bf16.mxu0 0
    %234 = vmatpush1.bf16.msra.mxu0 %v212
    %235 = vmatprep.subr.bf16.mxu0 0
    %236 = vmatpush1.bf16.msra.mxu0 %v213
    %237 = vmatprep.subr.bf16.mxu0 0
    %238 = vmatpush1.bf16.msra.mxu0 %v214
    %239 = vmatprep.subr.bf16.mxu0 0
    %240 = vmatpush1.bf16.msra.mxu0 0
    %241 = vmatprep.subr.bf16.mxu0 0
    %242 = vmatpush1.bf16.msra.mxu0 0
    %243 = vmatprep.subr.bf16.mxu0 0
    %244 = vmatpush1.bf16.msra.mxu0 0
    %245 = vmatprep.subr.bf16.mxu0 0
    %246 = vmatpush1.bf16.msra.mxu0 0
    %247 = vmatprep.subr.bf16.mxu0 0
    %248 = vmatpush1.bf16.msra.mxu0 0
    %249 = vmatprep.subr.bf16.mxu0 0
    %250 = vmatpush1.bf16.msra.mxu0 0
    %251 = vmatprep.subr.bf16.mxu0 0
    %252 = vmatpush1.bf16.msra.mxu0 0
    %253 = vmatprep.subr.bf16.mxu0 0
    %254 = vmatpush1.bf16.msra.mxu0 0
    %255 = vmatprep.mubr.bf16.mxu0 0
    %256 = vmatmul.mubr.bf16.gmra.mrb[0].mxu0 %v151
    %v257 = vpop.f32.mrb[0].mxu0
    %v258 = vadd.f32 %v173, %v257
    %v259 = vpop.f32.mrb[0].mxu0
    %v260 = vpop.f32.mrb[0].mxu0
    %v261 = vpop.f32.mrb[0].mxu0
    %262 = vdwg.mxu0
    %v263 = vtanh.pop %v258
    %v264 = vpack.c.bf16 %v263, %v263
    %v265 = vld [vmem:[#allocation8] sm:$0xf]
    %v266 = vld [vmem:[#allocation8 + $0x4] sm:$0xf]
    %v267 = vld [vmem:[#allocation8 + $0x8] sm:$0xf]
    %v268 = vld [vmem:[#allocation8 + $0xc] sm:$0xf]
    %v269 = vld [vmem:[#allocation8 + $0x10] sm:$0xf]
    %v270 = vld [vmem:[#allocation8 + $0x14] sm:$0xf]
    %v271 = vld [vmem:[#allocation8 + $0x18] sm:$0xf]
    %v272 = vld [vmem:[#allocation8 + $0x1c] sm:$0xf]
    %v273 = vld [vmem:[#allocation8 + $0x20] sm:$0xf]
    %v274 = vld [vmem:[#allocation8 + $0x24] sm:$0xf]
    %v275 = vld [vmem:[#allocation8 + $0x28] sm:$0xf]
    %v276 = vld [vmem:[#allocation8 + $0x2c] sm:$0xf]
    %v277 = vld [vmem:[#allocation8 + $0x30] sm:$0xf]
    %v278 = vld [vmem:[#allocation8 + $0x34] sm:$0xf]
    %v279 = vld [vmem:[#allocation8 + $0x38] sm:$0xf]
    %v280 = vld [vmem:[#allocation8 + $0x3c] sm:$0xf]
    %v281 = vld [vmem:[%s6] sm:$0x1]
    %v283 = vlaneseq
    %v284 = vshrl.u32 %v283, 7
    %v285 = vsub.s32 0, %v284
    %v286 = vrot.slane %v281, %v285
    %v304 = vunpack.c.l.b16 %v265
    %v305 = vunpack.c.l.b16 %v266
    %v306 = vunpack.c.l.b16 %v267
    %v307 = vunpack.c.l.b16 %v268
    %v308 = vunpack.c.l.b16 %v269
    %v309 = vunpack.c.l.b16 %v270
    %v310 = vunpack.c.l.b16 %v271
    %v311 = vunpack.c.l.b16 %v272
    %v312 = vunpack.c.l.b16 %v273
    %v313 = vunpack.c.l.b16 %v274
    %v314 = vunpack.c.l.b16 %v275
    %v315 = vunpack.c.l.b16 %v276
    %v316 = vunpack.c.l.b16 %v277
    %v317 = vunpack.c.l.b16 %v278
    %v318 = vunpack.c.l.b16 %v279
    %v319 = vunpack.c.l.b16 %v280
    %v320 = vpack.c.b16 %v305, %v304
    %v321 = vpack.c.b16 %v307, %v306
    %v322 = vpack.c.b16 %v309, %v308
    %v323 = vpack.c.b16 %v311, %v310
    %v324 = vpack.c.b16 %v313, %v312
    %v325 = vpack.c.b16 %v315, %v314
    %v326 = vpack.c.b16 %v317, %v316
    %v327 = vpack.c.b16 %v319, %v318
    %336 = vmatprep.subr.bf16.mxu0 0
    %337 = vmatpush1.bf16.msra.mxu0 %v320
    %338 = vmatprep.subr.bf16.mxu0 0
    %339 = vmatpush1.bf16.msra.mxu0 %v321
    %340 = vmatprep.subr.bf16.mxu0 0
    %341 = vmatpush1.bf16.msra.mxu0 %v322
    %342 = vmatprep.subr.bf16.mxu0 0
    %343 = vmatpush1.bf16.msra.mxu0 %v323
    %344 = vmatprep.subr.bf16.mxu0 0
    %345 = vmatpush1.bf16.msra.mxu0 %v324
    %346 = vmatprep.subr.bf16.mxu0 0
    %347 = vmatpush1.bf16.msra.mxu0 %v325
    %348 = vmatprep.subr.bf16.mxu0 0
    %349 = vmatpush1.bf16.msra.mxu0 %v326
    %350 = vmatprep.subr.bf16.mxu0 0
    %351 = vmatpush1.bf16.msra.mxu0 %v327
    %352 = vmatprep.subr.bf16.mxu0 0
    %353 = vmatpush1.bf16.msra.mxu0 0
    %354 = vmatprep.subr.bf16.mxu0 0
    %355 = vmatpush1.bf16.msra.mxu0 0
    %356 = vmatprep.subr.bf16.mxu0 0
    %357 = vmatpush1.bf16.msra.mxu0 0
    %358 = vmatprep.subr.bf16.mxu0 0
    %359 = vmatpush1.bf16.msra.mxu0 0
    %360 = vmatprep.subr.bf16.mxu0 0
    %361 = vmatpush1.bf16.msra.mxu0 0
    %362 = vmatprep.subr.bf16.mxu0 0
    %363 = vmatpush1.bf16.msra.mxu0 0
    %364 = vmatprep.subr.bf16.mxu0 0
    %365 = vmatpush1.bf16.msra.mxu0 0
    %366 = vmatprep.subr.bf16.mxu0 0
    %367 = vmatpush1.bf16.msra.mxu0 0
    %368 = vmatprep.mubr.bf16.mxu0 0
    %369 = vmatmul.mubr.bf16.gmra.mrb[0].mxu0 %v264
    %v370 = vpop.f32.mrb[0].mxu0
    %v371 = vadd.f32 %v286, %v370
    %v372 = vpop.f32.mrb[0].mxu0
    %v373 = vpop.f32.mrb[0].mxu0
    %v374 = vpop.f32.mrb[0].mxu0
    %375 = vdwg.mxu0
    %v376 = vmax.f32 %v371, 0.0
    %v377 = vand.u32 2147483647, %v371
    %v378 = vsub.f32 0.0, %v377
    %v379 = vmul.f32 %v378, 1.442695
    %v380 = vpow.pop %v379
    %v381 = vadd.f32 %v380, 1.0
    %v382 = vlog2.pop %v381
    %v383 = vmul.f32 %v382, 0.6931472
    %v384 = vmul.f32 -0.5, %v380
    %v385 = vadd.f32 %v384, 1.0
    %v386 = vmul.f32 %v385, %v380
    %v387 = vand.u32 2147483647, %v380
    %vm388 = vcmp.lt.f32.partialorder %v387, 0.0004427343
    %v389 = vsel %vm388, %v386, %v383
    %v390 = vadd.f32 %v376, %v389
    %v391 = vadd.f32 %v390, 1.0
    %392 = vst [vmem:[#allocation10] sm:$0xff] %v391
    // Predicated region
    $region46: #{tpu_custom_call.1} parent=1 // pred_check
      _
    $region47: #{tpu_custom_call.1} parent=1 // pred_check_branch
      %394 = sbr.rel (0) target = $region49
    $region48: #{tpu_custom_call.1} parent=1 // pred_region
      %s396 = ssub.s32 128, 128
      %397 = vsyncadd [#allocation4], %s396
      %s399 = sshll.u32 [#allocation10], 4
      %s400 = int_to_ptr.vmem [resolvable:$true] %s399
      %402 = dma.vmem_to_hbm [thread:$0]  %s400, 128, %s7, [#allocation4]
    $region49: #{tpu_custom_call.1} parent=1 // pred_fallthru
      _
    // Predicated region
    $region50: #{tpu_custom_call.1} parent=1 // pred_check
      _
    $region51: #{tpu_custom_call.1} parent=1 // pred_check_branch
      %404 = sbr.rel (0) target = $region53
    $region52: #{tpu_custom_call.1} parent=1 // pred_region
      %405 = dma.done [#allocation4], 128
    $region53: #{tpu_custom_call.1} parent=1 // pred_fallthru
      _
    %406 = vsyncpa [#allocation3], 1
    %407 = vsyncpa [#allocation6], 1
    %408 = vsyncpa [#allocation9], 1
    %409 = vsyncpa [#allocation4], 1

</llo_original>
